<compile_context>
chip_gen: v5e
topology: v5e:2x2
jax: 0.10.0
libtpu: 0.0.40
codegen_flags: <defaults>
</compile_context>

<pallas_src>
import functools

import jax
import jax.numpy as jnp
from jax.experimental import pallas as pl
from jax.experimental.pallas import tpu as pltpu


# ------------------------------ Pallas kernel -------------------------------

def _sa_kernel(x_ref, p_ref, o_ref, *, inv_hw, eps, hw):
    # x_ref: (1, 2, C2, HW)   p_ref: (3, 2, C2, 1)   o_ref: (1, C2, 2*HW)
    x = x_ref[0].astype(jnp.float32)          # (2, C2, HW), spatial on lanes
    alpha = p_ref[0]                          # (2, C2, 1)
    beta = p_ref[1]
    gamma = p_ref[2]

    # Two-pass per-channel statistics over the spatial (lane) axis.
    mean = jnp.sum(x, axis=-1, keepdims=True) * inv_hw          # (2, C2, 1)
    d = x - mean
    var = jnp.sum(d * d, axis=-1, keepdims=True) * inv_hw       # biased, like GroupNorm
    rstd = jax.lax.rsqrt(var + eps)

    # Unified per-channel sa formula:
    #   attention half : z = cweight*mean + cbias                       (alpha=0)
    #   GroupNorm half : z = sweight*(gn_w*xhat + gn_b) + sbias         (beta =0)
    z = alpha * (d * rstd) + (beta * mean + gamma)
    y = (x * jax.nn.sigmoid(z)).astype(o_ref.dtype)              # (2, C2, HW)

    # channel_shuffle(groups=2) folded into the store: parity slab j goes to the
    # lane columns [j*HW, (j+1)*HW) of the (C2, 2*HW) output block, which later
    # reshapes for free to output channel 2*i + j.  Slices are static and
    # lane-aligned (HW is a multiple of 128 here).
    o_ref[0, :, 0:hw] = y[0]
    o_ref[0, :, hw:] = y[1]


# --------------------------- parameter preparation --------------------------

def _sa_channel_params(p, channels, groups):
    """Expand sa_layer params to per-(input-)channel alpha/beta/gamma vectors."""
    half = channels // (2 * groups)
    zeros = jnp.zeros((half,), jnp.float32)
    alpha_g = jnp.concatenate([zeros, p["sweight"] * p["gn_w"]])
    beta_g = jnp.concatenate([p["cweight"], zeros])
    gamma_g = jnp.concatenate([p["cbias"], p["sweight"] * p["gn_b"] + p["sbias"]])
    alpha = jnp.tile(alpha_g, groups)
    beta = jnp.tile(beta_g, groups)
    gamma = jnp.tile(gamma_g, groups)
    return alpha, beta, gamma


# --------------------------------- forward ----------------------------------

def sa_layer_forward(x_nchw, p, *, groups, eps=1e-5):
    B, C, H, W = x_nchw.shape
    C2 = C // 2
    HW = H * W

    alpha, beta, gamma = _sa_channel_params(p, C, groups)
    # One resident parameter array: (3={alpha,beta,gamma}, parity j, channel i, 1).
    # Channel c = j*C2 + i, matching the x view below.
    pk = jnp.stack([alpha, beta, gamma]).reshape(3, 2, C2, 1).astype(jnp.float32)

    # Free (contiguous) reshape: channels split as (2, C2), spatial flattened
    # onto the 128-lane axis.
    x4 = x_nchw.reshape(B, 2, C2, HW)

    kern = functools.partial(_sa_kernel, inv_hw=1.0 / HW, eps=float(eps), hw=HW)
    out3 = pl.pallas_call(
        kern,
        grid=(B,),
        in_specs=[
            pl.BlockSpec((1, 2, C2, HW), lambda b: (b, 0, 0, 0)),
            # Constant block index -> fetched once, stays resident across steps.
            pl.BlockSpec((3, 2, C2, 1), lambda b: (0, 0, 0, 0)),
        ],
        # Output viewed as (B, C2, 2*HW): reshaping back is exactly
        # channel_shuffle(groups=2) — zero runtime cost.
        out_specs=pl.BlockSpec((1, C2, 2 * HW), lambda b: (b, 0, 0)),
        out_shape=jax.ShapeDtypeStruct((B, C2, 2 * HW), x_nchw.dtype),
        compiler_params=pltpu.CompilerParams(
            dimension_semantics=("parallel",)),
    )(x4, pk)

    # (B, C2, 2*HW) == (B, C2, 2, HW) -> output channel 2*i + j  (shuffled order).
    return out3.reshape(B, C, H, W)


# ------------------------- pure-JAX reference (spec) -------------------------

def sa_layer_ref(x, p, groups, eps=1e-5):
    B, C, H, W = x.shape
    half = C // (2 * groups)
    xg = x.reshape(B * groups, 2 * half, H, W)
    x0, x1 = xg[:, :half], xg[:, half:]
    cw = p["cweight"].reshape(1, half, 1, 1)
    cb = p["cbias"].reshape(1, half, 1, 1)
    sw = p["sweight"].reshape(1, half, 1, 1)
    sb = p["sbias"].reshape(1, half, 1, 1)
    gw = p["gn_w"].reshape(1, half, 1, 1)
    gb = p["gn_b"].reshape(1, half, 1, 1)
    # channel-attention branch
    xn = jnp.mean(x0, axis=(2, 3), keepdims=True)
    xn = x0 * jax.nn.sigmoid(cw * xn + cb)
    # GroupNorm branch (num_groups == num_channels -> per-channel over H,W)
    mu = jnp.mean(x1, axis=(2, 3), keepdims=True)
    var = jnp.mean((x1 - mu) ** 2, axis=(2, 3), keepdims=True)
    xh = (x1 - mu) / jnp.sqrt(var + eps)
    xs = x1 * jax.nn.sigmoid(sw * (xh * gw + gb) + sb)
    out = jnp.concatenate([xn, xs], axis=1).reshape(B, C, H, W)
    # channel_shuffle(groups=2)
    out = out.reshape(B, 2, C // 2, H, W).transpose(0, 2, 1, 3, 4).reshape(B, C, H, W)
    return out


# ----------------------------------- main ------------------------------------

if __name__ == "__main__":
    # channel must be divisible by 2*groups; use groups=5, channel=20 (small).
    B, C, H, W = 2, 20, 16, 16
    GROUPS = 5
    half = C // (2 * GROUPS)

    key = jax.random.PRNGKey(0)
    kx, *kp = jax.random.split(key, 8)
    x = jax.random.normal(kx, (B, C, H, W), dtype=jnp.float32)

    # Random params exercise both branches; also check the exact PyTorch default
    # init (cweight=sweight=0, cbias=sbias=1, gn affine = identity).
    params_rand = {
        "cweight": 0.3 * jax.random.normal(kp[0], (half,), jnp.float32),
        "cbias": 1.0 + 0.3 * jax.random.normal(kp[1], (half,), jnp.float32),
        "sweight": 0.3 * jax.random.normal(kp[2], (half,), jnp.float32),
        "sbias": 1.0 + 0.3 * jax.random.normal(kp[3], (half,), jnp.float32),
        "gn_w": 1.0 + 0.3 * jax.random.normal(kp[4], (half,), jnp.float32),
        "gn_b": 0.3 * jax.random.normal(kp[5], (half,), jnp.float32),
    }
    params_default = {
        "cweight": jnp.zeros((half,), jnp.float32),
        "cbias": jnp.ones((half,), jnp.float32),
        "sweight": jnp.zeros((half,), jnp.float32),
        "sbias": jnp.ones((half,), jnp.float32),
        "gn_w": jnp.ones((half,), jnp.float32),
        "gn_b": jnp.zeros((half,), jnp.float32),
    }

    fwd = jax.jit(functools.partial(sa_layer_forward, groups=GROUPS))

    for params in (params_rand, params_default):
        out = jax.block_until_ready(fwd(x, params))
        ref = sa_layer_ref(x, params, GROUPS)
        assert out.shape == (B, C, H, W)
        assert bool(jnp.all(jnp.isfinite(out)))
        assert bool(jnp.allclose(out, ref, atol=1e-4, rtol=1e-4)), "mismatch vs reference"

    # bf16 I/O path (the memory-bound win on v6e/v7x): stats/sigmoid stay f32
    # inside the kernel, only load/store are bf16.  Loose tolerance vs f32 ref.
    out_bf16 = jax.block_until_ready(fwd(x.astype(jnp.bfloat16), params_rand))
    assert out_bf16.dtype == jnp.bfloat16 and out_bf16.shape == (B, C, H, W)
    assert bool(jnp.all(jnp.isfinite(out_bf16.astype(jnp.float32))))
    ref_rand = sa_layer_ref(x, params_rand, GROUPS)
    assert bool(jnp.allclose(out_bf16.astype(jnp.float32), ref_rand,
                             atol=1.5e-1, rtol=5e-2)), "bf16 path mismatch"

    print("KERNEL_OK")
</pallas_src>

<mosaic_0001>
module attributes {stable_mosaic.version = 11 : i64} {
  func.func @_sa_kernel(%arg0: i32, %arg1: memref<1x2x10x256xf32, #tpu.memory_space<vmem>>, %arg2: memref<3x2x10x1xf32, #tpu.memory_space<vmem>>, %arg3: memref<1x10x512xf32, #tpu.memory_space<vmem>>) attributes {dimension_semantics = [#tpu.dimension_semantics<parallel>], iteration_bounds = array<i64: 2>, scalar_prefetch = 0 : i64, scratch_operands = 0 : i64, tpu.core_type = #tpu.core_type<tc>, window_params = [{transform_indices = @transform_0, window_bounds = array<i64: 1, 2, 10, 256>}, {pipeline_mode = #tpu.pipeline_mode<synchronous>, transform_indices = @transform_1, window_bounds = array<i64: 3, 2, 10, 1>}, {transform_indices = @transform_2, window_bounds = array<i64: 1, 10, 512>}]} {
    %c0 = arith.constant 0 : index
    %c0_0 = arith.constant 0 : index
    %c0_1 = arith.constant 0 : index
    %c0_2 = arith.constant 0 : index
    %0 = vector.load %arg1[%c0, %c0_0, %c0_1, %c0_2] : memref<1x2x10x256xf32, #tpu.memory_space<vmem>>, vector<1x2x10x256xf32>
    %1 = vector.shape_cast %0 : vector<1x2x10x256xf32> to vector<2x10x256xf32>
    %c0_3 = arith.constant 0 : index
    %c0_4 = arith.constant 0 : index
    %c0_5 = arith.constant 0 : index
    %c0_6 = arith.constant 0 : index
    %2 = vector.load %arg2[%c0_3, %c0_4, %c0_5, %c0_6] : memref<3x2x10x1xf32, #tpu.memory_space<vmem>>, vector<1x2x10x1xf32>
    %3 = vector.shape_cast %2 : vector<1x2x10x1xf32> to vector<2x10x1xf32>
    %c1 = arith.constant 1 : index
    %c0_7 = arith.constant 0 : index
    %c0_8 = arith.constant 0 : index
    %c0_9 = arith.constant 0 : index
    %4 = vector.load %arg2[%c1, %c0_7, %c0_8, %c0_9] : memref<3x2x10x1xf32, #tpu.memory_space<vmem>>, vector<1x2x10x1xf32>
    %5 = vector.shape_cast %4 : vector<1x2x10x1xf32> to vector<2x10x1xf32>
    %c2 = arith.constant 2 : index
    %c0_10 = arith.constant 0 : index
    %c0_11 = arith.constant 0 : index
    %c0_12 = arith.constant 0 : index
    %6 = vector.load %arg2[%c2, %c0_10, %c0_11, %c0_12] : memref<3x2x10x1xf32, #tpu.memory_space<vmem>>, vector<1x2x10x1xf32>
    %7 = vector.shape_cast %6 : vector<1x2x10x1xf32> to vector<2x10x1xf32>
    %cst = arith.constant dense<0.000000e+00> : vector<2x10xf32>
    %8 = vector.multi_reduction <add>, %1, %cst [2] : vector<2x10x256xf32> to vector<2x10xf32>
    %9 = vector.shape_cast %8 : vector<2x10xf32> to vector<2x10x1xf32>
    %cst_13 = arith.constant 3.906250e-03 : f32
    %10 = vector.broadcast %cst_13 : f32 to vector<2x10x1xf32>
    %11 = arith.mulf %9, %10 : vector<2x10x1xf32>
    %12 = vector.broadcast %11 : vector<2x10x1xf32> to vector<2x10x256xf32>
    %13 = arith.subf %1, %12 : vector<2x10x256xf32>
    %14 = arith.mulf %13, %13 : vector<2x10x256xf32>
    %cst_14 = arith.constant dense<0.000000e+00> : vector<2x10xf32>
    %15 = vector.multi_reduction <add>, %14, %cst_14 [2] : vector<2x10x256xf32> to vector<2x10xf32>
    %16 = vector.shape_cast %15 : vector<2x10xf32> to vector<2x10x1xf32>
    %cst_15 = arith.constant 3.906250e-03 : f32
    %17 = vector.broadcast %cst_15 : f32 to vector<2x10x1xf32>
    %18 = arith.mulf %16, %17 : vector<2x10x1xf32>
    %cst_16 = arith.constant 9.99999974E-6 : f32
    %19 = vector.broadcast %cst_16 : f32 to vector<2x10x1xf32>
    %20 = arith.addf %18, %19 : vector<2x10x1xf32>
    %21 = math.rsqrt %20 : vector<2x10x1xf32>
    %22 = vector.broadcast %21 : vector<2x10x1xf32> to vector<2x10x256xf32>
    %23 = arith.mulf %13, %22 : vector<2x10x256xf32>
    %24 = vector.broadcast %3 : vector<2x10x1xf32> to vector<2x10x256xf32>
    %25 = arith.mulf %24, %23 : vector<2x10x256xf32>
    %26 = arith.mulf %5, %11 : vector<2x10x1xf32>
    %27 = arith.addf %26, %7 : vector<2x10x1xf32>
    %28 = vector.broadcast %27 : vector<2x10x1xf32> to vector<2x10x256xf32>
    %29 = arith.addf %25, %28 : vector<2x10x256xf32>
    %30 = arith.negf %29 : vector<2x10x256xf32>
    %31 = math.exp %30 : vector<2x10x256xf32>
    %cst_17 = arith.constant 1.000000e+00 : f32
    %32 = vector.broadcast %cst_17 : f32 to vector<2x10x256xf32>
    %33 = arith.addf %32, %31 : vector<2x10x256xf32>
    %34 = arith.divf %32, %33 : vector<2x10x256xf32>
    %35 = arith.mulf %1, %34 : vector<2x10x256xf32>
    %36 = vector.extract_strided_slice %35 {offsets = [0, 0, 0], sizes = [1, 10, 256], strides = [1, 1, 1]} : vector<2x10x256xf32> to vector<1x10x256xf32>
    %37 = vector.shape_cast %36 : vector<1x10x256xf32> to vector<10x256xf32>
    %c0_18 = arith.constant 0 : index
    %c0_19 = arith.constant 0 : index
    %c0_20 = arith.constant 0 : index
    %38 = vector.load %arg3[%c0_18, %c0_19, %c0_20] : memref<1x10x512xf32, #tpu.memory_space<vmem>>, vector<1x10x256xf32>
    %39 = vector.shape_cast %38 : vector<1x10x256xf32> to vector<10x256xf32>
    %40 = vector.shape_cast %37 : vector<10x256xf32> to vector<1x10x256xf32>
    tpu.vector_store %arg3[%c0_18, %c0_19, %c0_20], %40 {strides = array<i32>} : memref<1x10x512xf32, #tpu.memory_space<vmem>>, vector<1x10x256xf32>,
    %41 = vector.extract_strided_slice %35 {offsets = [1, 0, 0], sizes = [1, 10, 256], strides = [1, 1, 1]} : vector<2x10x256xf32> to vector<1x10x256xf32>
    %42 = vector.shape_cast %41 : vector<1x10x256xf32> to vector<10x256xf32>
    %c0_21 = arith.constant 0 : index
    %c0_22 = arith.constant 0 : index
    %c256 = arith.constant 256 : index
    %43 = vector.load %arg3[%c0_21, %c0_22, %c256] : memref<1x10x512xf32, #tpu.memory_space<vmem>>, vector<1x10x256xf32>
    %44 = vector.shape_cast %43 : vector<1x10x256xf32> to vector<10x256xf32>
    %45 = vector.shape_cast %42 : vector<10x256xf32> to vector<1x10x256xf32>
    tpu.vector_store %arg3[%c0_21, %c0_22, %c256], %45 {strides = array<i32>} : memref<1x10x512xf32, #tpu.memory_space<vmem>>, vector<1x10x256xf32>,
    return
  }
  func.func @transform_0(%arg0: i32) -> (i32, i32, i32, i32) {
    %c0_i32 = arith.constant 0 : i32
    %c0_i32_0 = arith.constant 0 : i32
    %c0_i32_1 = arith.constant 0 : i32
    %c0_i32_2 = arith.constant 0 : i32
    return %arg0, %c0_i32, %c0_i32_0, %c0_i32_1 : i32, i32, i32, i32
  }
  func.func @transform_1(%arg0: i32) -> (i32, i32, i32, i32) {
    %c0_i32 = arith.constant 0 : i32
    %c0_i32_0 = arith.constant 0 : i32
    %c0_i32_1 = arith.constant 0 : i32
    %c0_i32_2 = arith.constant 0 : i32
    %c0_i32_3 = arith.constant 0 : i32
    return %c0_i32, %c0_i32_0, %c0_i32_1, %c0_i32_2 : i32, i32, i32, i32
  }
  func.func @transform_2(%arg0: i32) -> (i32, i32, i32) {
    %c0_i32 = arith.constant 0 : i32
    %c0_i32_0 = arith.constant 0 : i32
    %c0_i32_1 = arith.constant 0 : i32
    return %arg0, %c0_i32, %c0_i32_0 : i32, i32, i32
  }
}

</mosaic_0001>

<llo_original>
// kernel: tile.26
$region0: #{tile.26}
  #allocation0 [shape = 's32[1]{0}', space=sflag, size = 0x4, scoped, tag = 'scoped memory for tile.26']
  %s0 = inlined_call_operand.vmem [shape: f32[4], index: 0, kind: input, shape index: {}]
  %s1 = inlined_call_operand.vmem [shape: f32[5,4], index: 1, kind: output, shape index: {}]
  // Predicated region
  $region2: #{tile.26} parent=0 // pred_check
    _
  $region3: #{tile.26} parent=0 // pred_check_branch
    %3 = sbr.rel (0) target = $region5
  $region4: #{tile.26} parent=0 // pred_region
    _
  $region5: #{tile.26} parent=0 // pred_fallthru
    _
  %v4 = vld [vmem:[%s0] ss:$0 sm:$0xff]
  %5 = vst [vmem:[%s1] sm:$0xff] %v4

// kernel: sa_layer_forward.1
$region0: #{sa_layer_forward.1}
  #allocation0 [shape = 'u32[]', space=smem, size = 0x4, offset = 0x4, fixed_abs, tag = 'smem constant byte address 0x4 - core index']
  #allocation1 [shape = 'u32[72,128]{1,0:T(1,128)}', space=vmem, size = 0x9000, scoped, tag = 'internal scratch']
  %s0 = inlined_call_operand.vmem [shape: f32[2,2,10,256], index: 0, kind: input, shape index: {}]
  %s1 = inlined_call_operand.vmem [shape: f32[3,2,10,1], index: 1, kind: input, shape index: {}]
  %s2 = inlined_call_operand.vmem [shape: f32[2,10,512], index: 2, kind: output, shape index: {}]
  %s3 = sld [smem:[#allocation0]]
  $region41: #{sa_layer_forward.1} parent=0
    _
  %s5 = ssub.s32 1, %s3
  %s6 = scalar_select 0, %s5, %s3
  loop: start=0, step=1, limit=4
  $region2: #{sa_layer_forward.1} parent=0 // loop_pre_header
    _
  $region3: #{sa_layer_forward.1} parent=0 // loop_header
    %s8 = sphi 0, %s12
    %p9 = scmp.ge.s32.totalorder %s8, 4
    %s18 = sphi 0, %s20
    %s21 = sphi 0, %s18
    %s22 = sphi 0, %s21
    %s38 = sphi 0, %s22
    %s42 = sphi 0, %s42
    %s44 = sphi 0, %s42
    %s45 = sphi 0, %s44
    %s59 = sphi 0, %s45
    %s65 = sphi 0, %s67
    %s68 = sphi 0, %s65
    %s69 = sphi 0, %s68
    %s85 = sphi 0, %s69
  $region4: #{sa_layer_forward.1} parent=0 // loop_header_branch
    %11 = sbr.rel (%p9) target = $region8
  $region5: #{sa_layer_forward.1} parent=0 // loop_body
    %s13 = ssub.s32 %s8, 1
    %s14 = ssub.s32 %s8, 2
    %s15 = sadd.s32 %s8, 1
    %s16 = ssub.s32 %s8, %s15
    %p17 = scmp.eq.s32.totalorder %s16, 0
    %s19 = sadd.s32 %s18, 1
    %s20 = scalar_select %p17, %s18, %s19
    %p23 = pneg %p17
    %p24 = scmp.eq.s32.totalorder %s8, 1
    %p25 = por %p23, %p24
    %p26 = scmp.ne.s32.totalorder %s18, %s21
    %p27 = scmp.eq.s32.totalorder %s8, 0
    %p28 = por %p26, %p27
    %p29 = scmp.ne.s32.totalorder %s18, %s21
    %p30 = scmp.eq.s32.totalorder %s13, 1
    %p31 = por %p29, %p30
    %p32 = scmp.ne.s32.totalorder %s21, %s22
    %p33 = scmp.eq.s32.totalorder %s13, 0
    %p34 = por %p32, %p33
    %p35 = scmp.ne.s32.totalorder %s21, %s22
    %p36 = scmp.eq.s32.totalorder %s14, 1
    %p37 = por %p35, %p36
    %p39 = scmp.ne.s32.totalorder %s22, %s38
    %p40 = scmp.eq.s32.totalorder %s14, 0
    %p41 = por %p39, %p40
    %s43 = sadd.s32 %s42, 1
    %p46 = scmp.eq.s32.totalorder %s8, 1
    %p47 = scmp.ne.s32.totalorder %s42, %s44
    %p48 = scmp.eq.s32.totalorder %s8, 0
    %p49 = por %p47, %p48
    %p50 = scmp.ne.s32.totalorder %s42, %s44
    %p51 = scmp.eq.s32.totalorder %s13, 1
    %p52 = por %p50, %p51
    %p53 = scmp.ne.s32.totalorder %s44, %s45
    %p54 = scmp.eq.s32.totalorder %s13, 0
    %p55 = por %p53, %p54
    %p56 = scmp.ne.s32.totalorder %s44, %s45
    %p57 = scmp.eq.s32.totalorder %s14, 1
    %p58 = por %p56, %p57
    %p60 = scmp.ne.s32.totalorder %s45, %s59
    %p61 = scmp.eq.s32.totalorder %s14, 0
    %p62 = por %p60, %p61
    %s63 = ssub.s32 %s8, %s15
    %p64 = scmp.eq.s32.totalorder %s63, 0
    %s66 = sadd.s32 %s65, 1
    %s67 = scalar_select %p64, %s65, %s66
    %p70 = pneg %p64
    %p71 = scmp.eq.s32.totalorder %s8, 1
    %p72 = por %p70, %p71
    %p73 = scmp.ne.s32.totalorder %s65, %s68
    %p74 = scmp.eq.s32.totalorder %s8, 0
    %p75 = por %p73, %p74
    %p76 = scmp.ne.s32.totalorder %s65, %s68
    %p77 = scmp.eq.s32.totalorder %s13, 1
    %p78 = por %p76, %p77
    %p79 = scmp.ne.s32.totalorder %s68, %s69
    %p80 = scmp.eq.s32.totalorder %s13, 0
    %p81 = por %p79, %p80
    %p82 = scmp.ne.s32.totalorder %s68, %s69
    %p83 = scmp.eq.s32.totalorder %s14, 1
    %p84 = por %p82, %p83
    %p86 = scmp.ne.s32.totalorder %s69, %s85
    %p87 = scmp.eq.s32.totalorder %s14, 0
    %p88 = por %p86, %p87
    %p89 = scmp.le.s32.totalorder 1, %s8
    %p90 = scmp.lt.s32.totalorder %s8, 3
    %p91 = pnand %p89, %p90
    %p92 = pneg %p91
    // Predicated region
    $region9: #{sa_layer_forward.1} parent=5 // pred_check
      _
    $region10: #{sa_layer_forward.1} parent=5 // pred_check_branch
      %94 = sbr.rel (%p91) target = $region12
    $region11: #{sa_layer_forward.1} parent=5 // pred_region
      %s95 = ssub.s32 %s8, 1
      // Predicated region
      $region13: #{sa_layer_forward.1} parent=11 // pred_check
        %p96 = pneg %p55
      $region14: #{sa_layer_forward.1} parent=11 // pred_check_branch
        %98 = sbr.rel (%p96) target = $region16
      $region15: #{sa_layer_forward.1} parent=11 // pred_region
        _
      $region16: #{sa_layer_forward.1} parent=11 // pred_fallthru
        _
    $region12: #{sa_layer_forward.1} parent=5 // pred_fallthru
      _
    %p99 = scmp.lt.s32.totalorder %s8, 2
    // Predicated region
    $region17: #{sa_layer_forward.1} parent=5 // pred_check
      %p100 = pneg %p99
    $region18: #{sa_layer_forward.1} parent=5 // pred_check_branch
      %102 = sbr.rel (%p100) target = $region20
    $region19: #{sa_layer_forward.1} parent=5 // pred_region
      // Predicated region
      $region21: #{sa_layer_forward.1} parent=19 // pred_check
        %p103 = pneg %p28
      $region22: #{sa_layer_forward.1} parent=19 // pred_check_branch
        %105 = sbr.rel (%p103) target = $region24
      $region23: #{sa_layer_forward.1} parent=19 // pred_region
        %p106 = scmp.lt.s32.totalorder %s8, 1
        %s107 = scalar_select %p106, %s8, 1
        %s108 = smul.addr %s107, 8
        %s109 = smul.addr %s108, 8
        %s110 = scalar_lea.vmem %s0, %s109
      $region24: #{sa_layer_forward.1} parent=19 // pred_fallthru
        _
    $region20: #{sa_layer_forward.1} parent=5 // pred_fallthru
      _
    %p111 = scmp.le.s32.totalorder 1, %s8
    %p112 = scmp.lt.s32.totalorder %s8, 3
    %p113 = pnand %p111, %p112
    %p114 = pneg %p113
    // Predicated region
    $region25: #{sa_layer_forward.1} parent=5 // pred_check
      _
    $region26: #{sa_layer_forward.1} parent=5 // pred_check_branch
      %116 = sbr.rel (%p113) target = $region28
    $region27: #{sa_layer_forward.1} parent=5 // pred_region
      %s117 = ssub.s32 %s8, 1
      %p118 = scmp.lt.s32.totalorder %s13, 1
      %s119 = scalar_select %p118, %s13, 1
      %s120 = smul.addr %s119, 8
      %s121 = smul.addr %s120, 8
      %s122 = scalar_lea.vmem %s0, %s121
      %p123 = pneg %p34
      %p124 = pneg %p31
      %p125 = pneg %p55
      %p126 = pneg %p52
      %p127 = pneg %p81
      %p128 = pneg %p78
      %p129 = scmp.lt.s32.totalorder %s13, 1
      %s130 = scalar_select %p129, %s13, 1
      %s131 = smul.addr %s130, 8
      %s132 = smul.addr %s131, 8
      %s133 = scalar_lea.vmem %s2, %s132
      %p134 = scmp.lt.s32.totalorder %s13, 1
      %s135 = scalar_select %p134, %s13, 1
      %s136 = smul.addr %s135, 8
      %s137 = smul.addr %s136, 8
      %s138 = scalar_lea.vmem %s0, %s137
      %p139 = scmp.lt.s32.totalorder %s13, 1
      %s140 = scalar_select %p139, %s13, 1
      %s141 = smul.addr %s140, 8
      %s142 = smul.addr %s141, 8
      %s143 = scalar_lea.vmem %s2, %s142
      %v144 = vld [vmem:[%s138] sm:$0xff]
      %v145 = vld [vmem:[%s138 + $0x8] sm:$0xff]
      %v146 = vld [vmem:[%s138 + $0x10] sm:$0x3]
      %v147 = vld [vmem:[%s138 + $0x18] sm:$0x3]
      %v148 = vld [vmem:[%s138 + $0x20] sm:$0xff]
      %v149 = vld [vmem:[%s138 + $0x28] sm:$0xff]
      %v150 = vld [vmem:[%s138 + $0x30] sm:$0x3]
      %v151 = vld [vmem:[%s138 + $0x38] sm:$0x3]
      %v152 = vld [vmem:[%s1] sm:$0xff]
      %v153 = vld [vmem:[%s1 + $0x8] sm:$0x3]
      %v154 = vld [vmem:[%s1 + $0x10] sm:$0xff]
      %v155 = vld [vmem:[%s1 + $0x18] sm:$0x3]
      %s156 = scalar_lea.vmem %s1, 32
      %v157 = vld [vmem:[%s156] sm:$0xff]
      %v158 = vld [vmem:[%s156 + $0x8] sm:$0x3]
      %v159 = vld [vmem:[%s156 + $0x10] sm:$0xff]
      %v160 = vld [vmem:[%s156 + $0x18] sm:$0x3]
      %s161 = scalar_lea.vmem %s1, 64
      %v162 = vld [vmem:[%s161] sm:$0xff]
      %v163 = vld [vmem:[%s161 + $0x8] sm:$0x3]
      %v164 = vld [vmem:[%s161 + $0x10] sm:$0xff]
      %v165 = vld [vmem:[%s161 + $0x18] sm:$0x3]
      %v166 = vadd.f32 %v144, %v145
      %167 = vadd.xlane.f32.xlu0 %v166
      %v168 = vpop.xlane.xlu0 %167
      %vm169 = vcmask 1041408
      %v170 = vsel %vm169, %v146, 0.0
      %v171 = vsel %vm169, %v147, 0.0
      %v172 = vadd.f32 %v170, %v171
      %173 = vadd.xlane.f32.xlu0 %v172
      %v174 = vpop.xlane.xlu0 %173
      %v175 = vadd.f32 %v148, %v149
      %176 = vadd.xlane.f32.xlu0 %v175
      %v177 = vpop.xlane.xlu0 %176
      %v178 = vsel %vm169, %v150, 0.0
      %v179 = vsel %vm169, %v151, 0.0
      %v180 = vadd.f32 %v178, %v179
      %181 = vadd.xlane.f32.xlu0 %v180
      %v182 = vpop.xlane.xlu0 %181
      %v183 = vmul.f32 %v168, 0.00390625
      %v184 = vmul.f32 %v174, 0.00390625
      %v185 = vmul.f32 %v177, 0.00390625
      %v186 = vmul.f32 %v182, 0.00390625
      %v187 = vsub.f32 %v144, %v183
      %v188 = vsub.f32 %v145, %v183
      %v189 = vsub.f32 %v146, %v184
      %v190 = vsub.f32 %v147, %v184
      %v191 = vsub.f32 %v148, %v185
      %v192 = vsub.f32 %v149, %v185
      %v193 = vsub.f32 %v150, %v186
      %v194 = vsub.f32 %v151, %v186
      %v195 = vmul.f32 %v187, %v187
      %v196 = vmul.f32 %v188, %v188
      %v197 = vmul.f32 %v189, %v189
      %v198 = vmul.f32 %v190, %v190
      %v199 = vmul.f32 %v191, %v191
      %v200 = vmul.f32 %v192, %v192
      %v201 = vmul.f32 %v193, %v193
      %v202 = vmul.f32 %v194, %v194
      %v203 = vadd.f32 %v195, %v196
      %204 = vadd.xlane.f32.xlu0 %v203
      %v205 = vpop.xlane.xlu0 %204
      %v206 = vsel %vm169, %v197, 0.0
      %v207 = vsel %vm169, %v198, 0.0
      %v208 = vadd.f32 %v206, %v207
      %209 = vadd.xlane.f32.xlu0 %v208
      %v210 = vpop.xlane.xlu0 %209
      %v211 = vadd.f32 %v199, %v200
      %212 = vadd.xlane.f32.xlu0 %v211
      %v213 = vpop.xlane.xlu0 %212
      %v214 = vsel %vm169, %v201, 0.0
      %v215 = vsel %vm169, %v202, 0.0
      %v216 = vadd.f32 %v214, %v215
      %217 = vadd.xlane.f32.xlu0 %v216
      %v218 = vpop.xlane.xlu0 %217
      %v219 = vmul.f32 %v205, 0.00390625
      %v220 = vmul.f32 %v210, 0.00390625
      %v221 = vmul.f32 %v213, 0.00390625
      %v222 = vmul.f32 %v218, 0.00390625
      %v223 = vadd.f32 %v219, 1e-05
      %v224 = vadd.f32 %v220, 1e-05
      %v225 = vadd.f32 %v221, 1e-05
      %v226 = vadd.f32 %v222, 1e-05
      %v227 = vrsqrt.pop %v223
      %v228 = vmul.f32 %v227, %v223
      %v229 = vmul.f32 %v228, %v227
      %v230 = vmul.f32 0.5, %v229
      %v231 = vsub.f32 1.5, %v230
      %v232 = vmul.f32 %v227, %v231
      %vm233 = vweird.f32 %v223
      %vm234 = vweird.f32 %v227
      %vm235 = vmor %vm233, %vm234
      %v236 = vsel %vm235, %v227, %v232
      %v237 = vrsqrt.pop %v224
      %v238 = vmul.f32 %v237, %v224
      %v239 = vmul.f32 %v238, %v237
      %v240 = vmul.f32 0.5, %v239
      %v241 = vsub.f32 1.5, %v240
      %v242 = vmul.f32 %v237, %v241
      %vm243 = vweird.f32 %v224
      %vm244 = vweird.f32 %v237
      %vm245 = vmor %vm243, %vm244
      %v246 = vsel %vm245, %v237, %v242
      %v247 = vrsqrt.pop %v225
      %v248 = vmul.f32 %v247, %v225
      %v249 = vmul.f32 %v248, %v247
      %v250 = vmul.f32 0.5, %v249
      %v251 = vsub.f32 1.5, %v250
      %v252 = vmul.f32 %v247, %v251
      %vm253 = vweird.f32 %v225
      %vm254 = vweird.f32 %v247
      %vm255 = vmor %vm253, %vm254
      %v256 = vsel %vm255, %v247, %v252
      %v257 = vrsqrt.pop %v226
      %v258 = vmul.f32 %v257, %v226
      %v259 = vmul.f32 %v258, %v257
      %v260 = vmul.f32 0.5, %v259
      %v261 = vsub.f32 1.5, %v260
      %v262 = vmul.f32 %v257, %v261
      %vm263 = vweird.f32 %v226
      %vm264 = vweird.f32 %v257
      %vm265 = vmor %vm263, %vm264
      %v266 = vsel %vm265, %v257, %v262
      %v267 = vmul.f32 %v187, %v236
      %v268 = vmul.f32 %v188, %v236
      %v269 = vmul.f32 %v189, %v246
      %v270 = vmul.f32 %v190, %v246
      %v271 = vmul.f32 %v191, %v256
      %v272 = vmul.f32 %v192, %v256
      %v273 = vmul.f32 %v193, %v266
      %v274 = vmul.f32 %v194, %v266
      %276 = vset.pattern.permute.xlu0 0
      %277 = vperm.xlu0 %276, %v152
      %v278 = vpop.permute.xlu0 %277
      %281 = vset.pattern.permute.xlu0 0
      %282 = vperm.xlu0 %281, %v153
      %v283 = vpop.permute.xlu0 %282
      %286 = vset.pattern.permute.xlu0 0
      %287 = vperm.xlu0 %286, %v154
      %v288 = vpop.permute.xlu0 %287
      %291 = vset.pattern.permute.xlu0 0
      %292 = vperm.xlu0 %291, %v155
      %v293 = vpop.permute.xlu0 %292
      %v295 = vmul.f32 %v278, %v267
      %v296 = vmul.f32 %v278, %v268
      %v297 = vmul.f32 %v283, %v269
      %v298 = vmul.f32 %v283, %v270
      %v299 = vmul.f32 %v288, %v271
      %v300 = vmul.f32 %v288, %v272
      %v301 = vmul.f32 %v293, %v273
      %v302 = vmul.f32 %v293, %v274
      %v303 = vmul.f32 %v157, %v183
      %v304 = vmul.f32 %v158, %v184
      %v305 = vmul.f32 %v159, %v185
      %v306 = vmul.f32 %v160, %v186
      %v307 = vadd.f32 %v303, %v162
      %v308 = vadd.f32 %v304, %v163
      %v309 = vadd.f32 %v305, %v164
      %v310 = vadd.f32 %v306, %v165
      %312 = vset.pattern.permute.xlu0 0
      %313 = vperm.xlu0 %312, %v307
      %v314 = vpop.permute.xlu0 %313
      %317 = vset.pattern.permute.xlu0 0
      %318 = vperm.xlu0 %317, %v308
      %v319 = vpop.permute.xlu0 %318
      %322 = vset.pattern.permute.xlu0 0
      %323 = vperm.xlu0 %322, %v309
      %v324 = vpop.permute.xlu0 %323
      %327 = vset.pattern.permute.xlu0 0
      %328 = vperm.xlu0 %327, %v310
      %v329 = vpop.permute.xlu0 %328
      %v331 = vadd.f32 %v295, %v314
      %v332 = vadd.f32 %v296, %v314
      %v333 = vadd.f32 %v297, %v319
      %v334 = vadd.f32 %v298, %v319
      %v335 = vadd.f32 %v299, %v324
      %v336 = vadd.f32 %v300, %v324
      %v337 = vadd.f32 %v301, %v329
      %v338 = vadd.f32 %v302, %v329
      %v339 = vxor.u32 %v331, 2147483648
      %v340 = vxor.u32 %v332, 2147483648
      %v341 = vxor.u32 %v333, 2147483648
      %v342 = vxor.u32 %v334, 2147483648
      %v343 = vxor.u32 %v335, 2147483648
      %v344 = vxor.u32 %v336, 2147483648
      %v345 = vxor.u32 %v337, 2147483648
      %v346 = vxor.u32 %v338, 2147483648
      %v347 = vmul.f32 %v339, 1.442695
      %v348 = vpow.pop %v347
      %v349 = vmul.f32 %v340, 1.442695
      %v350 = vpow.pop %v349
      %v351 = vmul.f32 %v341, 1.442695
      %v352 = vpow.pop %v351
      %v353 = vmul.f32 %v342, 1.442695
      %v354 = vpow.pop %v353
      %v355 = vmul.f32 %v343, 1.442695
      %v356 = vpow.pop %v355
      %v357 = vmul.f32 %v344, 1.442695
      %v358 = vpow.pop %v357
      %v359 = vmul.f32 %v345, 1.442695
      %v360 = vpow.pop %v359
      %v361 = vmul.f32 %v346, 1.442695
      %v362 = vpow.pop %v361
      %v363 = vadd.f32 %v348, 1.0
      %v364 = vadd.f32 %v350, 1.0
      %v365 = vadd.f32 %v352, 1.0
      %v366 = vadd.f32 %v354, 1.0
      %v367 = vadd.f32 %v356, 1.0
      %v368 = vadd.f32 %v358, 1.0
      %v369 = vadd.f32 %v360, 1.0
      %v370 = vadd.f32 %v362, 1.0
      %v371 = vrcp.pop %v363
      %v372 = vmul.f32 %v363, %v371
      %v373 = vsub.f32 1.0, %v372
      %v374 = vmul.f32 %v371, %v373
      %v375 = vadd.f32 %v371, %v374
      %vm376 = vweird.f32 %v363
      %vm377 = vweird.f32 %v371
      %vm378 = vmor %vm376, %vm377
      %v379 = vsel %vm378, %v371, %v375
      %v380 = vand.u32 2147483647, %v363
      %vm381 = vcmp.eq.f32.partialorder %v380, 8.507059e+37
      %v382 = vand.u32 %v363, 2147483648
      %v383 = vor.u32 1.1754944e-38, %v382
      %v384 = vsel %vm381, %v383, %v379
      %v385 = vmul.f32 1.0, %v384
      %v386 = vrcp.pop %v364
      %v387 = vmul.f32 %v364, %v386
      %v388 = vsub.f32 1.0, %v387
      %v389 = vmul.f32 %v386, %v388
      %v390 = vadd.f32 %v386, %v389
      %vm391 = vweird.f32 %v364
      %vm392 = vweird.f32 %v386
      %vm393 = vmor %vm391, %vm392
      %v394 = vsel %vm393, %v386, %v390
      %v395 = vand.u32 2147483647, %v364
      %vm396 = vcmp.eq.f32.partialorder %v395, 8.507059e+37
      %v397 = vand.u32 %v364, 2147483648
      %v398 = vor.u32 1.1754944e-38, %v397
      %v399 = vsel %vm396, %v398, %v394
      %v400 = vmul.f32 1.0, %v399
      %v401 = vrcp.pop %v365
      %v402 = vmul.f32 %v365, %v401
      %v403 = vsub.f32 1.0, %v402
      %v404 = vmul.f32 %v401, %v403
      %v405 = vadd.f32 %v401, %v404
      %vm406 = vweird.f32 %v365
      %vm407 = vweird.f32 %v401
      %vm408 = vmor %vm406, %vm407
      %v409 = vsel %vm408, %v401, %v405
      %v410 = vand.u32 2147483647, %v365
      %vm411 = vcmp.eq.f32.partialorder %v410, 8.507059e+37
      %v412 = vand.u32 %v365, 2147483648
      %v413 = vor.u32 1.1754944e-38, %v412
      %v414 = vsel %vm411, %v413, %v409
      %v415 = vmul.f32 1.0, %v414
      %v416 = vrcp.pop %v366
      %v417 = vmul.f32 %v366, %v416
      %v418 = vsub.f32 1.0, %v417
      %v419 = vmul.f32 %v416, %v418
      %v420 = vadd.f32 %v416, %v419
      %vm421 = vweird.f32 %v366
      %vm422 = vweird.f32 %v416
      %vm423 = vmor %vm421, %vm422
      %v424 = vsel %vm423, %v416, %v420
      %v425 = vand.u32 2147483647, %v366
      %vm426 = vcmp.eq.f32.partialorder %v425, 8.507059e+37
      %v427 = vand.u32 %v366, 2147483648
      %v428 = vor.u32 1.1754944e-38, %v427
      %v429 = vsel %vm426, %v428, %v424
      %v430 = vmul.f32 1.0, %v429
      %v431 = vrcp.pop %v367
      %v432 = vmul.f32 %v367, %v431
      %v433 = vsub.f32 1.0, %v432
      %v434 = vmul.f32 %v431, %v433
      %v435 = vadd.f32 %v431, %v434
      %vm436 = vweird.f32 %v367
      %vm437 = vweird.f32 %v431
      %vm438 = vmor %vm436, %vm437
      %v439 = vsel %vm438, %v431, %v435
      %v440 = vand.u32 2147483647, %v367
      %vm441 = vcmp.eq.f32.partialorder %v440, 8.507059e+37
      %v442 = vand.u32 %v367, 2147483648
      %v443 = vor.u32 1.1754944e-38, %v442
      %v444 = vsel %vm441, %v443, %v439
      %v445 = vmul.f32 1.0, %v444
      %v446 = vrcp.pop %v368
      %v447 = vmul.f32 %v368, %v446
      %v448 = vsub.f32 1.0, %v447
      %v449 = vmul.f32 %v446, %v448
      %v450 = vadd.f32 %v446, %v449
      %vm451 = vweird.f32 %v368
      %vm452 = vweird.f32 %v446
      %vm453 = vmor %vm451, %vm452
      %v454 = vsel %vm453, %v446, %v450
      %v455 = vand.u32 2147483647, %v368
      %vm456 = vcmp.eq.f32.partialorder %v455, 8.507059e+37
      %v457 = vand.u32 %v368, 2147483648
      %v458 = vor.u32 1.1754944e-38, %v457
      %v459 = vsel %vm456, %v458, %v454
      %v460 = vmul.f32 1.0, %v459
      %v461 = vrcp.pop %v369
      %v462 = vmul.f32 %v369, %v461
      %v463 = vsub.f32 1.0, %v462
      %v464 = vmul.f32 %v461, %v463
      %v465 = vadd.f32 %v461, %v464
      %vm466 = vweird.f32 %v369
      %vm467 = vweird.f32 %v461
      %vm468 = vmor %vm466, %vm467
      %v469 = vsel %vm468, %v461, %v465
      %v470 = vand.u32 2147483647, %v369
      %vm471 = vcmp.eq.f32.partialorder %v470, 8.507059e+37
      %v472 = vand.u32 %v369, 2147483648
      %v473 = vor.u32 1.1754944e-38, %v472
      %v474 = vsel %vm471, %v473, %v469
      %v475 = vmul.f32 1.0, %v474
      %v476 = vrcp.pop %v370
      %v477 = vmul.f32 %v370, %v476
      %v478 = vsub.f32 1.0, %v477
      %v479 = vmul.f32 %v476, %v478
      %v480 = vadd.f32 %v476, %v479
      %vm481 = vweird.f32 %v370
      %vm482 = vweird.f32 %v476
      %vm483 = vmor %vm481, %vm482
      %v484 = vsel %vm483, %v476, %v480
      %v485 = vand.u32 2147483647, %v370
      %vm486 = vcmp.eq.f32.partialorder %v485, 8.507059e+37
      %v487 = vand.u32 %v370, 2147483648
      %v488 = vor.u32 1.1754944e-38, %v487
      %v489 = vsel %vm486, %v488, %v484
      %v490 = vmul.f32 1.0, %v489
      %v491 = vmul.f32 %v144, %v385
      %v492 = vmul.f32 %v145, %v400
      %v493 = vmul.f32 %v146, %v415
      %v494 = vmul.f32 %v147, %v430
      %v495 = vmul.f32 %v148, %v445
      %v496 = vmul.f32 %v149, %v460
      %v497 = vmul.f32 %v150, %v475
      %v498 = vmul.f32 %v151, %v490
      %499 = vst [vmem:[%s143] sm:$0xff] %v491
      %500 = vst [vmem:[%s143 + $0x8] sm:$0xff] %v492
      %501 = vst [vmem:[%s143 + $0x20] sm:$0x3] %v493
      %502 = vst [vmem:[%s143 + $0x28] sm:$0x3] %v494
      %503 = vst [vmem:[%s143 + $0x10] sm:$0xff] %v495
      %504 = vst [vmem:[%s143 + $0x18] sm:$0xff] %v496
      %505 = vst [vmem:[%s143 + $0x30] sm:$0x3] %v497
      %506 = vst [vmem:[%s143 + $0x38] sm:$0x3] %v498
      %p507 = scmp.lt.s32.totalorder %s13, 1
      %s508 = scalar_select %p507, %s13, 1
      %s509 = smul.addr %s508, 8
      %s510 = smul.addr %s509, 8
      %s511 = scalar_lea.vmem %s2, %s510
      // Predicated region
      $region29: #{sa_layer_forward.1} parent=27 // pred_check
        %p512 = pneg %p78
      $region30: #{sa_layer_forward.1} parent=27 // pred_check_branch
        %514 = sbr.rel (%p512) target = $region32
      $region31: #{sa_layer_forward.1} parent=27 // pred_region
        _
      $region32: #{sa_layer_forward.1} parent=27 // pred_fallthru
        _
    $region28: #{sa_layer_forward.1} parent=5 // pred_fallthru
      _
    %p515 = scmp.le.s32.totalorder 2, %s8
    // Predicated region
    $region33: #{sa_layer_forward.1} parent=5 // pred_check
      %p516 = pneg %p515
    $region34: #{sa_layer_forward.1} parent=5 // pred_check_branch
      %518 = sbr.rel (%p516) target = $region36
    $region35: #{sa_layer_forward.1} parent=5 // pred_region
      %s519 = ssub.s32 %s8, 2
      // Predicated region
      $region37: #{sa_layer_forward.1} parent=35 // pred_check
        %p520 = pneg %p84
      $region38: #{sa_layer_forward.1} parent=35 // pred_check_branch
        %522 = sbr.rel (%p520) target = $region40
      $region39: #{sa_layer_forward.1} parent=35 // pred_region
        %p523 = scmp.lt.s32.totalorder %s14, 1
        %s524 = scalar_select %p523, %s14, 1
        %s525 = smul.addr %s524, 8
        %s526 = smul.addr %s525, 8
        %s527 = scalar_lea.vmem %s2, %s526
      $region40: #{sa_layer_forward.1} parent=35 // pred_fallthru
        _
    $region36: #{sa_layer_forward.1} parent=5 // pred_fallthru
      _
  $region6: #{sa_layer_forward.1} parent=0 // loop_footer
    %s12 = sadd.s32 1, %s8
  $region7: #{sa_layer_forward.1} parent=0 // loop_footer_branch
    %7 = sbr.rel target = $region3
  $region8: #{sa_layer_forward.1} parent=0 // loop_exit
    _

</llo_original>
